<compile_context>
chip_gen: v7x
topology: tpu7x:2x2x1
jax: 0.10.0
libtpu: 0.0.40
codegen_flags: <defaults>
</compile_context>

<pallas_src>
import functools

import jax
import jax.numpy as jnp
from jax import lax
from jax.experimental import pallas as pl
from jax.experimental.pallas import tpu as pltpu


def _round_up(x, m):
    return -(-x // m) * m


def _encoder_kernel(x_ref, w_ref, b_ref, o_ref, *, K, L, L_pad, E, TB, SUB, C_pad):
    """One batch tile.

    x_ref: (TB, S_pad, E)   bf16  raw (padded) embeddings
    w_ref: (K, E, C_pad)    bf16  conv weights, tap-major
    b_ref: (1, C_pad)       f32   bias
    o_ref: (TB, C_pad)      out   pooled features
    """
    n_sub = TB // SUB

    # Window rows l >= L touch padded input -> mask them out of the max (exact).
    if L_pad > L:
        l_valid = lax.broadcasted_iota(jnp.int32, (1, L_pad, C_pad), 1) < L
    else:
        l_valid = None

    def body(j, carry):
        b0 = pl.multiple_of(j * SUB, SUB)
        # K shifted-window matmuls (contraction E), f32 accumulation on the MXU.
        acc = None
        for dh in range(K):
            xs = x_ref[pl.ds(b0, SUB), pl.ds(dh, L_pad), :]        # (SUB, L_pad, E)
            xs = xs.reshape(SUB * L_pad, E)                        # aligned merge
            part = jnp.dot(xs, w_ref[dh],
                           preferred_element_type=jnp.float32)     # (SUB*L_pad, C_pad)
            acc = part if acc is None else acc + part
        scores = acc.reshape(SUB, L_pad, C_pad)
        if l_valid is not None:
            scores = jnp.where(l_valid, scores, -jnp.inf)
        m = jnp.max(scores, axis=1)                                 # (SUB, C_pad)
        # bias + ReLU after the max (exact: ReLU monotone, bias per-channel const).
        o_ref[pl.ds(b0, SUB), :] = jnp.maximum(m + b_ref[...], 0.0).astype(o_ref.dtype)
        return carry

    lax.fori_loop(0, n_sub, body, 0, unroll=True)


def data_encoder_forward(src, weight, bias, *, kernel_size):
    """src: (1, B, S, E); weight: (C, 1, K, E) torch layout; bias: (C,)."""
    assert src.shape[0] == 1, "channel dim of src must be 1"
    assert kernel_size % 2 == 1, "Kernel size must be odd!"
    _, B, S, E = src.shape
    C = weight.shape[0]
    K = kernel_size
    assert S >= K, "sequence length must be >= kernel_size"
    L = S - K + 1

    # ---- tiling -----------------------------------------------------------
    SUB = 8                                     # sub-batch streamed inside kernel
    L_pad = _round_up(L, 16)                    # bf16 sublane-pack friendly
    S_pad = _round_up(max(S, L_pad + K - 1), 8)
    C_pad = _round_up(C, 128)                   # lane-dense output stores

    B8 = _round_up(B, SUB)
    if B8 >= 128:
        TB = 64                                 # big tiles amortize per-step overhead
    elif B8 >= 16:
        TB = _round_up(B8 // 2, SUB)            # keep >= 2 grid steps (v7x megacore)
    else:
        TB = B8
    B_pad = _round_up(B8, TB)

    # ---- operand prep (cheap pad + cast only, no im2col) -------------------
    x = src[0].astype(jnp.bfloat16)                                  # (B, S, E)
    x = jnp.pad(x, ((0, B_pad - B), (0, S_pad - S), (0, 0)))
    wk = jnp.transpose(weight[:, 0, :, :], (1, 2, 0)).astype(jnp.bfloat16)  # (K,E,C)
    b2 = bias.astype(jnp.float32)
    if C_pad > C:
        wk = jnp.pad(wk, ((0, 0), (0, 0), (0, C_pad - C)))
        b2 = jnp.pad(b2, (0, C_pad - C))
    b2 = b2.reshape(1, C_pad)

    # ---- explicit VMEM budget (v7x: 64 MiB physical) -----------------------
    x_blk = TB * S_pad * E * 2
    w_blk = K * E * C_pad * 2
    o_blk = TB * C_pad * jnp.dtype(src.dtype).itemsize
    vmem_bytes = 2 * x_blk + 2 * w_blk + 2 * o_blk + 2 * C_pad * 4 + (2 << 20)
    vmem_bytes = int(min(max(vmem_bytes, 16 << 20), 64 << 20))

    kernel = functools.partial(_encoder_kernel, K=K, L=L, L_pad=L_pad, E=E,
                               TB=TB, SUB=SUB, C_pad=C_pad)
    out = pl.pallas_call(
        kernel,
        out_shape=jax.ShapeDtypeStruct((B_pad, C_pad), src.dtype),
        grid_spec=pltpu.PrefetchScalarGridSpec(
            num_scalar_prefetch=0,
            grid=(B_pad // TB,),
            in_specs=[
                pl.BlockSpec((TB, S_pad, E), lambda i: (i, 0, 0)),
                pl.BlockSpec((K, E, C_pad), lambda i: (0, 0, 0)),
                pl.BlockSpec((1, C_pad), lambda i: (0, 0)),
            ],
            out_specs=pl.BlockSpec((TB, C_pad), lambda i: (i, 0)),
        ),
        compiler_params=pltpu.CompilerParams(
            dimension_semantics=("parallel",),
            vmem_limit_bytes=vmem_bytes),
    )(x, wk, b2)
    return out[:B, :C]


def _reference_forward(src, weight, bias, *, kernel_size):
    """Pure-JAX f32 reference with identical semantics (for verification)."""
    _, B, S, E = src.shape
    C = weight.shape[0]
    K = kernel_size
    L = S - K + 1
    x = src[0].astype(jnp.float32)                                   # (B, S, E)
    windows = jnp.stack([x[:, dh:dh + L, :] for dh in range(K)], axis=2)  # (B,L,K,E)
    windows = windows.reshape(B, L, K * E)
    wmat = weight[:, 0, :, :].reshape(C, K * E).T.astype(jnp.float32)     # (K*E, C)
    scores = jnp.einsum("blf,fc->blc", windows, wmat) + bias[None, None, :]
    scores = jnp.maximum(scores, 0.0)
    return jnp.max(scores, axis=1).astype(src.dtype)                 # (B, C)


if __name__ == "__main__":
    # Small shapes consistent with the module.
    B, S, E = 2, 16, 32          # batch, seq_len, emb_dim
    C, K = 128, 3                # channels, kernel_size (odd)

    key = jax.random.PRNGKey(0)
    k_src, k_w, k_b = jax.random.split(key, 3)

    src = jax.random.normal(k_src, (1, B, S, E), dtype=jnp.float32)
    # Deterministic synthetic parameters (torch Conv2d shapes: (C, 1, K, E), (C,)).
    weight = jax.random.normal(k_w, (C, 1, K, E), dtype=jnp.float32) * 0.05
    bias = jax.random.normal(k_b, (C,), dtype=jnp.float32) * 0.05

    out = data_encoder_forward(src, weight, bias, kernel_size=K)
    out = jax.block_until_ready(out)

    ref = _reference_forward(src, weight, bias, kernel_size=K)
    assert out.shape == (B, C), out.shape
    # bf16 operands with f32 accumulation: loosened tolerance vs the f32 reference.
    assert jnp.allclose(out, ref, atol=3e-2, rtol=3e-2), "mismatch vs reference"

    print("KERNEL_OK")
</pallas_src>

<mosaic_0001>
module attributes {stable_mosaic.version = 11 : i64} {
  func.func @_encoder_kernel(%arg0: i32, %arg1: memref<8x24x32xbf16, #tpu.memory_space<vmem>>, %arg2: memref<3x32x128xbf16, #tpu.memory_space<vmem>>, %arg3: memref<1x128xf32, #tpu.memory_space<vmem>>, %arg4: memref<8x128xf32, #tpu.memory_space<vmem>>) attributes {dimension_semantics = [#tpu.dimension_semantics<parallel>], iteration_bounds = array<i64: 1>, scalar_prefetch = 0 : i64, scratch_operands = 0 : i64, tpu.core_type = #tpu.core_type<tc>, window_params = [{transform_indices = @transform_0, window_bounds = array<i64: 8, 24, 32>}, {pipeline_mode = #tpu.pipeline_mode<synchronous>, transform_indices = @transform_1, window_bounds = array<i64: 3, 32, 128>}, {pipeline_mode = #tpu.pipeline_mode<synchronous>, transform_indices = @transform_2, window_bounds = array<i64: 1, 128>}, {transform_indices = @transform_3, window_bounds = array<i64: 8, 128>}]} {
    %0 = tpu.iota {dimensions = array<i32: 1>} : vector<1x16x128xi32>
    %c14_i32 = arith.constant 14 : i32
    %1 = vector.broadcast %c14_i32 : i32 to vector<1x16x128xi32>
    %2 = arith.cmpi slt, %0, %1 : vector<1x16x128xi32>
    %c0_i32 = arith.constant 0 : i32
    %c8_i32 = arith.constant 8 : i32
    %3 = arith.muli %c0_i32, %c8_i32 : i32
    %4 = tpu.assume_multiple %3, 8 : i32
    %5 = arith.index_cast %4 : i32 to index
    %c0 = arith.constant 0 : index
    %c0_0 = arith.constant 0 : index
    %6 = vector.load %arg1[%5, %c0, %c0_0] : memref<8x24x32xbf16, #tpu.memory_space<vmem>>, vector<8x16x32xbf16>
    %7 = vector.shape_cast %6 : vector<8x16x32xbf16> to vector<128x32xbf16>
    %c0_1 = arith.constant 0 : index
    %c0_2 = arith.constant 0 : index
    %c0_3 = arith.constant 0 : index
    %8 = vector.load %arg2[%c0_1, %c0_2, %c0_3] : memref<3x32x128xbf16, #tpu.memory_space<vmem>>, vector<1x32x128xbf16>
    %9 = vector.shape_cast %8 : vector<1x32x128xbf16> to vector<32x128xbf16>
    %cst = arith.constant dense<0.000000e+00> : vector<128x128xf32>
    %10 = tpu.matmul %7, %9, %cst {dimension_numbers = #tpu.dot_dimension_numbers<[1], [0], [0], [1], [0, 0, 1, 1], [], []>} : vector<128x32xbf16>, vector<32x128xbf16>, vector<128x128xf32> -> vector<128x128xf32>
    %11 = arith.index_cast %4 : i32 to index
    %c1 = arith.constant 1 : index
    %c0_4 = arith.constant 0 : index
    %12 = vector.load %arg1[%11, %c1, %c0_4] : memref<8x24x32xbf16, #tpu.memory_space<vmem>>, vector<8x16x32xbf16>
    %13 = vector.shape_cast %12 : vector<8x16x32xbf16> to vector<128x32xbf16>
    %c1_5 = arith.constant 1 : index
    %c0_6 = arith.constant 0 : index
    %c0_7 = arith.constant 0 : index
    %14 = vector.load %arg2[%c1_5, %c0_6, %c0_7] : memref<3x32x128xbf16, #tpu.memory_space<vmem>>, vector<1x32x128xbf16>
    %15 = vector.shape_cast %14 : vector<1x32x128xbf16> to vector<32x128xbf16>
    %cst_8 = arith.constant dense<0.000000e+00> : vector<128x128xf32>
    %16 = tpu.matmul %13, %15, %cst_8 {dimension_numbers = #tpu.dot_dimension_numbers<[1], [0], [0], [1], [0, 0, 1, 1], [], []>} : vector<128x32xbf16>, vector<32x128xbf16>, vector<128x128xf32> -> vector<128x128xf32>
    %17 = arith.addf %10, %16 : vector<128x128xf32>
    %18 = arith.index_cast %4 : i32 to index
    %c2 = arith.constant 2 : index
    %c0_9 = arith.constant 0 : index
    %19 = vector.load %arg1[%18, %c2, %c0_9] : memref<8x24x32xbf16, #tpu.memory_space<vmem>>, vector<8x16x32xbf16>
    %20 = vector.shape_cast %19 : vector<8x16x32xbf16> to vector<128x32xbf16>
    %c2_10 = arith.constant 2 : index
    %c0_11 = arith.constant 0 : index
    %c0_12 = arith.constant 0 : index
    %21 = vector.load %arg2[%c2_10, %c0_11, %c0_12] : memref<3x32x128xbf16, #tpu.memory_space<vmem>>, vector<1x32x128xbf16>
    %22 = vector.shape_cast %21 : vector<1x32x128xbf16> to vector<32x128xbf16>
    %cst_13 = arith.constant dense<0.000000e+00> : vector<128x128xf32>
    %23 = tpu.matmul %20, %22, %cst_13 {dimension_numbers = #tpu.dot_dimension_numbers<[1], [0], [0], [1], [0, 0, 1, 1], [], []>} : vector<128x32xbf16>, vector<32x128xbf16>, vector<128x128xf32> -> vector<128x128xf32>
    %24 = arith.addf %17, %23 : vector<128x128xf32>
    %25 = vector.shape_cast %24 : vector<128x128xf32> to vector<8x16x128xf32>
    %cst_14 = arith.constant 0xFF800000 : f32
    %26 = vector.shape_cast %2 : vector<1x16x128xi1> to vector<1x16x128xi1>
    %27 = vector.broadcast %26 : vector<1x16x128xi1> to vector<8x16x128xi1>
    %28 = vector.broadcast %cst_14 : f32 to vector<8x16x128xf32>
    %29 = arith.select %27, %25, %28 : vector<8x16x128xi1>, vector<8x16x128xf32>
    %cst_15 = arith.constant dense<0xFF800000> : vector<8x128xf32>
    %30 = vector.multi_reduction <maximumf>, %29, %cst_15 [1] : vector<8x16x128xf32> to vector<8x128xf32>
    %c0_16 = arith.constant 0 : index
    %c0_17 = arith.constant 0 : index
    %31 = vector.load %arg3[%c0_16, %c0_17] : memref<1x128xf32, #tpu.memory_space<vmem>>, vector<1x128xf32>
    %32 = vector.broadcast %31 : vector<1x128xf32> to vector<8x128xf32>
    %33 = arith.addf %30, %32 : vector<8x128xf32>
    %cst_18 = arith.constant 0.000000e+00 : f32
    %34 = vector.broadcast %cst_18 : f32 to vector<8x128xf32>
    %35 = arith.maximumf %33, %34 : vector<8x128xf32>
    %36 = arith.index_cast %4 : i32 to index
    %c0_19 = arith.constant 0 : index
    %37 = vector.load %arg4[%36, %c0_19] : memref<8x128xf32, #tpu.memory_space<vmem>>, vector<8x128xf32>
    tpu.vector_store %arg4[%36, %c0_19], %35 {strides = array<i32>} : memref<8x128xf32, #tpu.memory_space<vmem>>, vector<8x128xf32>,
    %c1_i32 = arith.constant 1 : i32
    return
  }
  func.func @transform_0(%arg0: i32) -> (i32, i32, i32) {
    %c0_i32 = arith.constant 0 : i32
    %c0_i32_0 = arith.constant 0 : i32
    %c0_i32_1 = arith.constant 0 : i32
    return %arg0, %c0_i32, %c0_i32_0 : i32, i32, i32
  }
  func.func @transform_1(%arg0: i32) -> (i32, i32, i32) {
    %c0_i32 = arith.constant 0 : i32
    %c0_i32_0 = arith.constant 0 : i32
    %c0_i32_1 = arith.constant 0 : i32
    %c0_i32_2 = arith.constant 0 : i32
    return %c0_i32, %c0_i32_0, %c0_i32_1 : i32, i32, i32
  }
  func.func @transform_2(%arg0: i32) -> (i32, i32) {
    %c0_i32 = arith.constant 0 : i32
    %c0_i32_0 = arith.constant 0 : i32
    %c0_i32_1 = arith.constant 0 : i32
    return %c0_i32, %c0_i32_0 : i32, i32
  }
  func.func @transform_3(%arg0: i32) -> (i32, i32) {
    %c0_i32 = arith.constant 0 : i32
    %c0_i32_0 = arith.constant 0 : i32
    return %arg0, %c0_i32 : i32, i32
  }
}

</mosaic_0001>

<llo_original>
// kernel: tpu_custom_call.1
$region0: #{tpu_custom_call.1}
  #allocation0 [shape = 'u32[]', space=smem, size = 0x4, offset = 0x4, fixed_abs, tag = 'smem constant byte address 0x4 - core index']
  #allocation1 [shape = 'u32[144,128]{1,0:T(1,128)}', space=vmem, size = 0x12000, scoped, tag = 'internal scratch']
  %s0 = inlined_call_operand.hbm [shape: bf16[8,24,32], index: 0, kind: input, shape index: {}]
  %s1 = inlined_call_operand.hbm [shape: bf16[3,32,128], index: 1, kind: input, shape index: {}]
  %s2 = inlined_call_operand.vmem [shape: f32[1,128], index: 2, kind: input, shape index: {}]
  %s3 = inlined_call_operand.hbm [shape: f32[8,128], index: 3, kind: output, shape index: {}]
  %s4 = sld [smem:[#allocation0]]
  $region30: #{tpu_custom_call.1} parent=0
    _
  %s6 = ssub.s32 1, %s4
  %s7 = scalar_select 0, %s6, %s4
  $region1: #{tpu_custom_call.1} parent=0
    #allocation2 [shape = 'u8[49152]{0}', space=vmem, size = 0xc000, scoped, tag = 'input window, operand 0, single buffered']
    #allocation3 [shape = 's32[1]{0}', space=sflag, size = 0x4, scoped, tag = 'scoped memory for tpu_custom_call.1']
    #allocation4 [shape = 's32[1]{0}', space=sflag, size = 0x4, scoped, tag = 'scoped memory for tpu_custom_call.1']
    #allocation5 [shape = 'u8[24576]{0}', space=vmem, size = 0x6000, scoped, tag = 'input window, operand 1, single buffered']
    #allocation6 [shape = 's32[1]{0}', space=sflag, size = 0x4, scoped, tag = 'scoped memory for tpu_custom_call.1']
    #allocation7 [shape = 'u8[4096]{0}', space=vmem, size = 0x1000, scoped, tag = 'output window, operand 0, single buffered']
    %8 = vsyncpa [#allocation3], 0
    %9 = vsyncpa [#allocation6], 0
    %10 = vsyncpa [#allocation4], 0
    // Predicated region
    $region2: #{tpu_custom_call.1} parent=1 // pred_check
      _
    $region3: #{tpu_custom_call.1} parent=1 // pred_check_branch
      %12 = sbr.rel (0) target = $region5
    $region4: #{tpu_custom_call.1} parent=1 // pred_region
      %s14 = ssub.s32 1536, 1536
      %15 = vsyncadd [#allocation3], %s14
      %s16 = sshll.u32 [#allocation2], 4
      %s17 = int_to_ptr.vmem [resolvable:$true] %s16
      %22 = dma.hbm_to_vmem [thread:$0]  %s0, 1536, %s17, [#allocation3], 64, 64, 4
    $region5: #{tpu_custom_call.1} parent=1 // pred_fallthru
      _
    // Predicated region
    $region6: #{tpu_custom_call.1} parent=1 // pred_check
      _
    $region7: #{tpu_custom_call.1} parent=1 // pred_check_branch
      %24 = sbr.rel (0) target = $region9
    $region8: #{tpu_custom_call.1} parent=1 // pred_region
      %s26 = ssub.s32 768, 768
      %27 = vsyncadd [#allocation6], %s26
      %s28 = sshll.u32 [#allocation5], 4
      %s29 = int_to_ptr.vmem [resolvable:$true] %s28
      %34 = dma.hbm_to_vmem [thread:$0]  %s1, 768, %s29, [#allocation6], 64, 64, 4
    $region9: #{tpu_custom_call.1} parent=1 // pred_fallthru
      _
    // Predicated region
    $region10: #{tpu_custom_call.1} parent=1 // pred_check
      _
    $region11: #{tpu_custom_call.1} parent=1 // pred_check_branch
      %36 = sbr.rel (0) target = $region13
    $region12: #{tpu_custom_call.1} parent=1 // pred_region
      _
    $region13: #{tpu_custom_call.1} parent=1 // pred_fallthru
      _
    // Predicated region
    $region14: #{tpu_custom_call.1} parent=1 // pred_check
      _
    $region15: #{tpu_custom_call.1} parent=1 // pred_check_branch
      %38 = sbr.rel (0) target = $region17
    $region16: #{tpu_custom_call.1} parent=1 // pred_region
      %39 = dma.done [#allocation3], 1536
    $region17: #{tpu_custom_call.1} parent=1 // pred_fallthru
      _
    // Predicated region
    $region18: #{tpu_custom_call.1} parent=1 // pred_check
      _
    $region19: #{tpu_custom_call.1} parent=1 // pred_check_branch
      %41 = sbr.rel (0) target = $region21
    $region20: #{tpu_custom_call.1} parent=1 // pred_region
      %42 = dma.done [#allocation6], 768
    $region21: #{tpu_custom_call.1} parent=1 // pred_fallthru
      _
    %v44 = vlaneseq
    %v45 = vshrl.u32 %v44, 7
    %v46 = vadd.s32 %v45, 8
    %vm47 = vcmp.lt.s32.totalorder %v45, 14
    %vm48 = vcmp.lt.s32.totalorder %v46, 14
    %s49 = smul.u32 0, 3
    %s50 = smul.addr %s49, 4
    %s51 = scalar_lea.vmem [#allocation2], %s50
    %v52 = vld [vmem:[%s51] sm:$0xf]
    %v53 = vld [vmem:[%s51 + $0x4] sm:$0xf]
    %v54 = vld [vmem:[%s51 + $0xc] sm:$0xf]
    %v55 = vld [vmem:[%s51 + $0x10] sm:$0xf]
    %v56 = vld [vmem:[%s51 + $0x18] sm:$0xf]
    %v57 = vld [vmem:[%s51 + $0x1c] sm:$0xf]
    %v58 = vld [vmem:[%s51 + $0x24] sm:$0xf]
    %v59 = vld [vmem:[%s51 + $0x28] sm:$0xf]
    %v60 = vld [vmem:[%s51 + $0x30] sm:$0xf]
    %v61 = vld [vmem:[%s51 + $0x34] sm:$0xf]
    %v62 = vld [vmem:[%s51 + $0x3c] sm:$0xf]
    %v63 = vld [vmem:[%s51 + $0x40] sm:$0xf]
    %v64 = vld [vmem:[%s51 + $0x48] sm:$0xf]
    %v65 = vld [vmem:[%s51 + $0x4c] sm:$0xf]
    %v66 = vld [vmem:[%s51 + $0x54] sm:$0xf]
    %v67 = vld [vmem:[%s51 + $0x58] sm:$0xf]
    %v68 = vld [vmem:[#allocation5] sm:$0xf]
    %v69 = vld [vmem:[#allocation5 + $0x4] sm:$0xf]
    %v70 = vld [vmem:[#allocation5 + $0x8] sm:$0xf]
    %v71 = vld [vmem:[#allocation5 + $0xc] sm:$0xf]
    %v72 = vld [vmem:[%s51 + $0x8] sm:$0x1]
    %v73 = vld [vmem:[%s51 + $0x14] sm:$0x1]
    %v74 = vld [vmem:[%s51 + $0x20] sm:$0x1]
    %v75 = vld [vmem:[%s51 + $0x2c] sm:$0x1]
    %v76 = vld [vmem:[%s51 + $0x38] sm:$0x1]
    %v77 = vld [vmem:[%s51 + $0x44] sm:$0x1]
    %v78 = vld [vmem:[%s51 + $0x50] sm:$0x1]
    %v79 = vld [vmem:[%s51 + $0x5c] sm:$0x1]
    %vm80 = vsmask.f32 3328
    %vm81 = vsmask.f32 7440
    %vm82 = vmor %vm80, %vm81
    %v84 = vshrl.u32 %v52, 16
    %v86 = vrot.slane %v84, 4
    %v87 = vshll.u32 %v52, 16
    %v89 = vrot.slane %v87, 5
    %v90 = vor.u32 %v86, %v89
    %v91 = vrot.slane %v90, 4
    %v93 = vshll.u32 %v53, 16
    %v95 = vrot.slane %v93, 5
    %v96 = vsel %vm82, %v91, %v95
    %v97 = vshrl.u32 %v53, 16
    %v99 = vrot.slane %v97, 4
    %v100 = vor.u32 %v99, %v95
    %v101 = vrot.slane %v100, 4
    %v103 = vshll.u32 %v72, 16
    %v105 = vrot.slane %v103, 5
    %v106 = vsel %vm82, %v101, %v105
    %v108 = vshrl.u32 %v54, 16
    %v110 = vrot.slane %v108, 4
    %v111 = vshll.u32 %v54, 16
    %v113 = vrot.slane %v111, 5
    %v114 = vor.u32 %v110, %v113
    %v115 = vrot.slane %v114, 4
    %v117 = vshll.u32 %v55, 16
    %v119 = vrot.slane %v117, 5
    %v120 = vsel %vm82, %v115, %v119
    %v121 = vshrl.u32 %v55, 16
    %v123 = vrot.slane %v121, 4
    %v124 = vor.u32 %v123, %v119
    %v125 = vrot.slane %v124, 4
    %v127 = vshll.u32 %v73, 16
    %v129 = vrot.slane %v127, 5
    %v130 = vsel %vm82, %v125, %v129
    %v132 = vshrl.u32 %v56, 16
    %v134 = vrot.slane %v132, 4
    %v135 = vshll.u32 %v56, 16
    %v137 = vrot.slane %v135, 5
    %v138 = vor.u32 %v134, %v137
    %v139 = vrot.slane %v138, 4
    %v141 = vshll.u32 %v57, 16
    %v143 = vrot.slane %v141, 5
    %v144 = vsel %vm82, %v139, %v143
    %v145 = vshrl.u32 %v57, 16
    %v147 = vrot.slane %v145, 4
    %v148 = vor.u32 %v147, %v143
    %v149 = vrot.slane %v148, 4
    %v151 = vshll.u32 %v74, 16
    %v153 = vrot.slane %v151, 5
    %v154 = vsel %vm82, %v149, %v153
    %v156 = vshrl.u32 %v58, 16
    %v158 = vrot.slane %v156, 4
    %v159 = vshll.u32 %v58, 16
    %v161 = vrot.slane %v159, 5
    %v162 = vor.u32 %v158, %v161
    %v163 = vrot.slane %v162, 4
    %v165 = vshll.u32 %v59, 16
    %v167 = vrot.slane %v165, 5
    %v168 = vsel %vm82, %v163, %v167
    %v169 = vshrl.u32 %v59, 16
    %v171 = vrot.slane %v169, 4
    %v172 = vor.u32 %v171, %v167
    %v173 = vrot.slane %v172, 4
    %v175 = vshll.u32 %v75, 16
    %v177 = vrot.slane %v175, 5
    %v178 = vsel %vm82, %v173, %v177
    %v180 = vshrl.u32 %v60, 16
    %v182 = vrot.slane %v180, 4
    %v183 = vshll.u32 %v60, 16
    %v185 = vrot.slane %v183, 5
    %v186 = vor.u32 %v182, %v185
    %v187 = vrot.slane %v186, 4
    %v189 = vshll.u32 %v61, 16
    %v191 = vrot.slane %v189, 5
    %v192 = vsel %vm82, %v187, %v191
    %v193 = vshrl.u32 %v61, 16
    %v195 = vrot.slane %v193, 4
    %v196 = vor.u32 %v195, %v191
    %v197 = vrot.slane %v196, 4
    %v199 = vshll.u32 %v76, 16
    %v201 = vrot.slane %v199, 5
    %v202 = vsel %vm82, %v197, %v201
    %v204 = vshrl.u32 %v62, 16
    %v206 = vrot.slane %v204, 4
    %v207 = vshll.u32 %v62, 16
    %v209 = vrot.slane %v207, 5
    %v210 = vor.u32 %v206, %v209
    %v211 = vrot.slane %v210, 4
    %v213 = vshll.u32 %v63, 16
    %v215 = vrot.slane %v213, 5
    %v216 = vsel %vm82, %v211, %v215
    %v217 = vshrl.u32 %v63, 16
    %v219 = vrot.slane %v217, 4
    %v220 = vor.u32 %v219, %v215
    %v221 = vrot.slane %v220, 4
    %v223 = vshll.u32 %v77, 16
    %v225 = vrot.slane %v223, 5
    %v226 = vsel %vm82, %v221, %v225
    %v228 = vshrl.u32 %v64, 16
    %v230 = vrot.slane %v228, 4
    %v231 = vshll.u32 %v64, 16
    %v233 = vrot.slane %v231, 5
    %v234 = vor.u32 %v230, %v233
    %v235 = vrot.slane %v234, 4
    %v237 = vshll.u32 %v65, 16
    %v239 = vrot.slane %v237, 5
    %v240 = vsel %vm82, %v235, %v239
    %v241 = vshrl.u32 %v65, 16
    %v243 = vrot.slane %v241, 4
    %v244 = vor.u32 %v243, %v239
    %v245 = vrot.slane %v244, 4
    %v247 = vshll.u32 %v78, 16
    %v249 = vrot.slane %v247, 5
    %v250 = vsel %vm82, %v245, %v249
    %v252 = vshrl.u32 %v66, 16
    %v254 = vrot.slane %v252, 4
    %v255 = vshll.u32 %v66, 16
    %v257 = vrot.slane %v255, 5
    %v258 = vor.u32 %v254, %v257
    %v259 = vrot.slane %v258, 4
    %v261 = vshll.u32 %v67, 16
    %v263 = vrot.slane %v261, 5
    %v264 = vsel %vm82, %v259, %v263
    %v265 = vshrl.u32 %v67, 16
    %v267 = vrot.slane %v265, 4
    %v268 = vor.u32 %v267, %v263
    %v269 = vrot.slane %v268, 4
    %v271 = vshll.u32 %v79, 16
    %v273 = vrot.slane %v271, 5
    %v274 = vsel %vm82, %v269, %v273
    %s275 = scalar_lea.vmem [#allocation5], 16
    %v276 = vld [vmem:[%s275] sm:$0xf]
    %v277 = vld [vmem:[%s275 + $0x4] sm:$0xf]
    %v278 = vld [vmem:[%s275 + $0x8] sm:$0xf]
    %v279 = vld [vmem:[%s275 + $0xc] sm:$0xf]
    %v280 = vunpack.c.l.b16 %v96
    %v281 = vunpack.c.l.b16 %v106
    %v282 = vunpack.c.l.b16 %v120
    %v283 = vunpack.c.l.b16 %v130
    %v284 = vunpack.c.l.b16 %v144
    %v285 = vunpack.c.l.b16 %v154
    %v286 = vunpack.c.l.b16 %v168
    %v287 = vunpack.c.l.b16 %v178
    %v288 = vunpack.c.l.b16 %v192
    %v289 = vunpack.c.l.b16 %v202
    %v290 = vunpack.c.l.b16 %v216
    %v291 = vunpack.c.l.b16 %v226
    %v292 = vunpack.c.l.b16 %v240
    %v293 = vunpack.c.l.b16 %v250
    %v294 = vunpack.c.l.b16 %v264
    %v295 = vunpack.c.l.b16 %v274
    %v296 = vpack.c.b16 %v281, %v280
    %v297 = vpack.c.b16 %v283, %v282
    %v298 = vpack.c.b16 %v285, %v284
    %v299 = vpack.c.b16 %v287, %v286
    %v300 = vpack.c.b16 %v289, %v288
    %v301 = vpack.c.b16 %v291, %v290
    %v302 = vpack.c.b16 %v293, %v292
    %v303 = vpack.c.b16 %v295, %v294
    %v308 = vunpack.c.l.b16 %v276
    %v309 = vunpack.c.l.b16 %v277
    %v310 = vunpack.c.l.b16 %v278
    %v311 = vunpack.c.l.b16 %v279
    %v312 = vpack.c.b16 %v309, %v308
    %v313 = vpack.c.b16 %v311, %v310
    %vm316 = vcmask 261120
    %v318 = vsel %vm316, %v296, 0
    %v321 = vsel %vm316, %v297, 0
    %v324 = vsel %vm316, %v298, 0
    %v327 = vsel %vm316, %v299, 0
    %v330 = vsel %vm316, %v300, 0
    %v333 = vsel %vm316, %v301, 0
    %v336 = vsel %vm316, %v302, 0
    %v339 = vsel %vm316, %v303, 0
    %341 = vmatprep.subr.bf16.mxu0 0
    %342 = vmatpush1.bf16.msra.mxu0 %v312
    %343 = vmatprep.subr.bf16.mxu0 0
    %344 = vmatpush1.bf16.msra.mxu0 %v313
    %345 = vmatprep.subr.bf16.mxu0 0
    %346 = vmatpush1.bf16.msra.mxu0 0
    %347 = vmatprep.subr.bf16.mxu0 0
    %348 = vmatpush1.bf16.msra.mxu0 0
    %349 = vmatprep.subr.bf16.mxu0 0
    %350 = vmatpush1.bf16.msra.mxu0 0
    %351 = vmatprep.subr.bf16.mxu0 0
    %352 = vmatpush1.bf16.msra.mxu0 0
    %353 = vmatprep.subr.bf16.mxu0 0
    %354 = vmatpush1.bf16.msra.mxu0 0
    %355 = vmatprep.subr.bf16.mxu0 0
    %356 = vmatpush1.bf16.msra.mxu0 0
    %357 = vmatprep.subr.bf16.mxu0 0
    %358 = vmatpush1.bf16.msra.mxu0 0
    %359 = vmatprep.subr.bf16.mxu0 0
    %360 = vmatpush1.bf16.msra.mxu0 0
    %361 = vmatprep.subr.bf16.mxu0 0
    %362 = vmatpush1.bf16.msra.mxu0 0
    %363 = vmatprep.subr.bf16.mxu0 0
    %364 = vmatpush1.bf16.msra.mxu0 0
    %365 = vmatprep.subr.bf16.mxu0 0
    %366 = vmatpush1.bf16.msra.mxu0 0
    %367 = vmatprep.subr.bf16.mxu0 0
    %368 = vmatpush1.bf16.msra.mxu0 0
    %369 = vmatprep.subr.bf16.mxu0 0
    %370 = vmatpush1.bf16.msra.mxu0 0
    %371 = vmatprep.subr.bf16.mxu0 0
    %372 = vmatpush1.bf16.msra.mxu0 0
    %373 = vmatprep.mubr.bf16.mxu0 0
    %374 = vmatmul.mubr.bf16.gmra.mrb[0].mxu0 %v318
    %v375 = vpop.f32.mrb[0].mxu0
    %v376 = vadd.f32 0.0, %v375
    %v377 = vpop.f32.mrb[0].mxu0
    %v378 = vpop.f32.mrb[0].mxu0
    %v379 = vadd.f32 0.0, %v378
    %v380 = vpop.f32.mrb[0].mxu0
    %381 = vmatprep.mubr.bf16.mxu0 0
    %382 = vmatmul.mubr.bf16.gmra.mrb[0].mxu0 %v321
    %v383 = vpop.f32.mrb[0].mxu0
    %v384 = vadd.f32 0.0, %v383
    %v385 = vpop.f32.mrb[0].mxu0
    %v386 = vpop.f32.mrb[0].mxu0
    %v387 = vadd.f32 0.0, %v386
    %v388 = vpop.f32.mrb[0].mxu0
    %389 = vmatprep.mubr.bf16.mxu0 0
    %390 = vmatmul.mubr.bf16.gmra.mrb[0].mxu0 %v324
    %v391 = vpop.f32.mrb[0].mxu0
    %v392 = vadd.f32 0.0, %v391
    %v393 = vpop.f32.mrb[0].mxu0
    %v394 = vpop.f32.mrb[0].mxu0
    %v395 = vadd.f32 0.0, %v394
    %v396 = vpop.f32.mrb[0].mxu0
    %397 = vmatprep.mubr.bf16.mxu0 0
    %398 = vmatmul.mubr.bf16.gmra.mrb[0].mxu0 %v327
    %v399 = vpop.f32.mrb[0].mxu0
    %v400 = vadd.f32 0.0, %v399
    %v401 = vpop.f32.mrb[0].mxu0
    %v402 = vpop.f32.mrb[0].mxu0
    %v403 = vadd.f32 0.0, %v402
    %v404 = vpop.f32.mrb[0].mxu0
    %405 = vmatprep.mubr.bf16.mxu0 0
    %406 = vmatmul.mubr.bf16.gmra.mrb[0].mxu0 %v330
    %v407 = vpop.f32.mrb[0].mxu0
    %v408 = vadd.f32 0.0, %v407
    %v409 = vpop.f32.mrb[0].mxu0
    %v410 = vpop.f32.mrb[0].mxu0
    %v411 = vadd.f32 0.0, %v410
    %v412 = vpop.f32.mrb[0].mxu0
    %413 = vmatprep.mubr.bf16.mxu0 0
    %414 = vmatmul.mubr.bf16.gmra.mrb[0].mxu0 %v333
    %v415 = vpop.f32.mrb[0].mxu0
    %v416 = vadd.f32 0.0, %v415
    %v417 = vpop.f32.mrb[0].mxu0
    %v418 = vpop.f32.mrb[0].mxu0
    %v419 = vadd.f32 0.0, %v418
    %v420 = vpop.f32.mrb[0].mxu0
    %421 = vmatprep.mubr.bf16.mxu0 0
    %422 = vmatmul.mubr.bf16.gmra.mrb[0].mxu0 %v336
    %v423 = vpop.f32.mrb[0].mxu0
    %v424 = vadd.f32 0.0, %v423
    %v425 = vpop.f32.mrb[0].mxu0
    %v426 = vpop.f32.mrb[0].mxu0
    %v427 = vadd.f32 0.0, %v426
    %v428 = vpop.f32.mrb[0].mxu0
    %429 = vmatprep.mubr.bf16.mxu0 0
    %430 = vmatmul.mubr.bf16.gmra.mrb[0].mxu0 %v339
    %v431 = vpop.f32.mrb[0].mxu0
    %v432 = vadd.f32 0.0, %v431
    %v433 = vpop.f32.mrb[0].mxu0
    %v434 = vpop.f32.mrb[0].mxu0
    %v435 = vadd.f32 0.0, %v434
    %v436 = vpop.f32.mrb[0].mxu0
    %437 = vdwg.mxu0
    %v454 = vunpack.c.l.b16 %v52
    %v455 = vunpack.c.l.b16 %v53
    %v456 = vunpack.c.l.b16 %v54
    %v457 = vunpack.c.l.b16 %v55
    %v458 = vunpack.c.l.b16 %v56
    %v459 = vunpack.c.l.b16 %v57
    %v460 = vunpack.c.l.b16 %v58
    %v461 = vunpack.c.l.b16 %v59
    %v462 = vunpack.c.l.b16 %v60
    %v463 = vunpack.c.l.b16 %v61
    %v464 = vunpack.c.l.b16 %v62
    %v465 = vunpack.c.l.b16 %v63
    %v466 = vunpack.c.l.b16 %v64
    %v467 = vunpack.c.l.b16 %v65
    %v468 = vunpack.c.l.b16 %v66
    %v469 = vunpack.c.l.b16 %v67
    %v470 = vpack.c.b16 %v455, %v454
    %v471 = vpack.c.b16 %v457, %v456
    %v472 = vpack.c.b16 %v459, %v458
    %v473 = vpack.c.b16 %v461, %v460
    %v474 = vpack.c.b16 %v463, %v462
    %v475 = vpack.c.b16 %v465, %v464
    %v476 = vpack.c.b16 %v467, %v466
    %v477 = vpack.c.b16 %v469, %v468
    %v482 = vunpack.c.l.b16 %v68
    %v483 = vunpack.c.l.b16 %v69
    %v484 = vunpack.c.l.b16 %v70
    %v485 = vunpack.c.l.b16 %v71
    %v486 = vpack.c.b16 %v483, %v482
    %v487 = vpack.c.b16 %v485, %v484
    %v491 = vsel %vm316, %v470, 0
    %v494 = vsel %vm316, %v471, 0
    %v497 = vsel %vm316, %v472, 0
    %v500 = vsel %vm316, %v473, 0
    %v503 = vsel %vm316, %v474, 0
    %v506 = vsel %vm316, %v475, 0
    %v509 = vsel %vm316, %v476, 0
    %v512 = vsel %vm316, %v477, 0
    %514 = vmatprep.subr.bf16.mxu0 0
    %515 = vmatpush1.bf16.msra.mxu0 %v486
    %516 = vmatprep.subr.bf16.mxu0 0
    %517 = vmatpush1.bf16.msra.mxu0 %v487
    %518 = vmatprep.subr.bf16.mxu0 0
    %519 = vmatpush1.bf16.msra.mxu0 0
    %520 = vmatprep.subr.bf16.mxu0 0
    %521 = vmatpush1.bf16.msra.mxu0 0
    %522 = vmatprep.subr.bf16.mxu0 0
    %523 = vmatpush1.bf16.msra.mxu0 0
    %524 = vmatprep.subr.bf16.mxu0 0
    %525 = vmatpush1.bf16.msra.mxu0 0
    %526 = vmatprep.subr.bf16.mxu0 0
    %527 = vmatpush1.bf16.msra.mxu0 0
    %528 = vmatprep.subr.bf16.mxu0 0
    %529 = vmatpush1.bf16.msra.mxu0 0
    %530 = vmatprep.subr.bf16.mxu0 0
    %531 = vmatpush1.bf16.msra.mxu0 0
    %532 = vmatprep.subr.bf16.mxu0 0
    %533 = vmatpush1.bf16.msra.mxu0 0
    %534 = vmatprep.subr.bf16.mxu0 0
    %535 = vmatpush1.bf16.msra.mxu0 0
    %536 = vmatprep.subr.bf16.mxu0 0
    %537 = vmatpush1.bf16.msra.mxu0 0
    %538 = vmatprep.subr.bf16.mxu0 0
    %539 = vmatpush1.bf16.msra.mxu0 0
    %540 = vmatprep.subr.bf16.mxu0 0
    %541 = vmatpush1.bf16.msra.mxu0 0
    %542 = vmatprep.subr.bf16.mxu0 0
    %543 = vmatpush1.bf16.msra.mxu0 0
    %544 = vmatprep.subr.bf16.mxu0 0
    %545 = vmatpush1.bf16.msra.mxu0 0
    %546 = vmatprep.mubr.bf16.mxu0 0
    %547 = vmatmul.mubr.bf16.gmra.mrb[0].mxu0 %v491
    %v548 = vpop.f32.mrb[0].mxu0
    %v549 = vadd.f32 %v376, %v548
    %v550 = vpop.f32.mrb[0].mxu0
    %v551 = vpop.f32.mrb[0].mxu0
    %v552 = vadd.f32 %v379, %v551
    %v553 = vpop.f32.mrb[0].mxu0
    %554 = vmatprep.mubr.bf16.mxu0 0
    %555 = vmatmul.mubr.bf16.gmra.mrb[0].mxu0 %v494
    %v556 = vpop.f32.mrb[0].mxu0
    %v557 = vadd.f32 %v384, %v556
    %v558 = vpop.f32.mrb[0].mxu0
    %v559 = vpop.f32.mrb[0].mxu0
    %v560 = vadd.f32 %v387, %v559
    %v561 = vpop.f32.mrb[0].mxu0
    %562 = vmatprep.mubr.bf16.mxu0 0
    %563 = vmatmul.mubr.bf16.gmra.mrb[0].mxu0 %v497
    %v564 = vpop.f32.mrb[0].mxu0
    %v565 = vadd.f32 %v392, %v564
    %v566 = vpop.f32.mrb[0].mxu0
    %v567 = vpop.f32.mrb[0].mxu0
    %v568 = vadd.f32 %v395, %v567
    %v569 = vpop.f32.mrb[0].mxu0
    %570 = vmatprep.mubr.bf16.mxu0 0
    %571 = vmatmul.mubr.bf16.gmra.mrb[0].mxu0 %v500
    %v572 = vpop.f32.mrb[0].mxu0
    %v573 = vadd.f32 %v400, %v572
    %v574 = vpop.f32.mrb[0].mxu0
    %v575 = vpop.f32.mrb[0].mxu0
    %v576 = vadd.f32 %v403, %v575
    %v577 = vpop.f32.mrb[0].mxu0
    %578 = vmatprep.mubr.bf16.mxu0 0
    %579 = vmatmul.mubr.bf16.gmra.mrb[0].mxu0 %v503
    %v580 = vpop.f32.mrb[0].mxu0
    %v581 = vadd.f32 %v408, %v580
    %v582 = vpop.f32.mrb[0].mxu0
    %v583 = vpop.f32.mrb[0].mxu0
    %v584 = vadd.f32 %v411, %v583
    %v585 = vpop.f32.mrb[0].mxu0
    %586 = vmatprep.mubr.bf16.mxu0 0
    %587 = vmatmul.mubr.bf16.gmra.mrb[0].mxu0 %v506
    %v588 = vpop.f32.mrb[0].mxu0
    %v589 = vadd.f32 %v416, %v588
    %v590 = vpop.f32.mrb[0].mxu0
    %v591 = vpop.f32.mrb[0].mxu0
    %v592 = vadd.f32 %v419, %v591
    %v593 = vpop.f32.mrb[0].mxu0
    %594 = vmatprep.mubr.bf16.mxu0 0
    %595 = vmatmul.mubr.bf16.gmra.mrb[0].mxu0 %v509
    %v596 = vpop.f32.mrb[0].mxu0
    %v597 = vadd.f32 %v424, %v596
    %v598 = vpop.f32.mrb[0].mxu0
    %v599 = vpop.f32.mrb[0].mxu0
    %v600 = vadd.f32 %v427, %v599
    %v601 = vpop.f32.mrb[0].mxu0
    %602 = vmatprep.mubr.bf16.mxu0 0
    %603 = vmatmul.mubr.bf16.gmra.mrb[0].mxu0 %v512
    %v604 = vpop.f32.mrb[0].mxu0
    %v605 = vadd.f32 %v432, %v604
    %v606 = vpop.f32.mrb[0].mxu0
    %v607 = vpop.f32.mrb[0].mxu0
    %v608 = vadd.f32 %v435, %v607
    %v609 = vpop.f32.mrb[0].mxu0
    %610 = vdwg.mxu0
    %v611 = vld [vmem:[%s51] sm:$0xe]
    %v612 = vld [vmem:[%s51 + $0xc] sm:$0xe]
    %v613 = vld [vmem:[%s51 + $0x18] sm:$0xe]
    %v614 = vld [vmem:[%s51 + $0x24] sm:$0xe]
    %v615 = vld [vmem:[%s51 + $0x30] sm:$0xe]
    %v616 = vld [vmem:[%s51 + $0x3c] sm:$0xe]
    %v617 = vld [vmem:[%s51 + $0x48] sm:$0xe]
    %v618 = vld [vmem:[%s51 + $0x54] sm:$0xe]
    %vm635 = vcmask 1042432
    %vm636 = vcmask 1046532
    %vm637 = vmor %vm635, %vm636
    %v638 = vrot.slane %v611, 5
    %v639 = vrot.slane %v638, 4
    %v640 = vrot.slane %v53, 5
    %v641 = vsel %vm637, %v639, %v640
    %v642 = vrot.slane %v640, 4
    %v643 = vrot.slane %v72, 5
    %v644 = vsel %vm637, %v642, %v643
    %v645 = vrot.slane %v612, 5
    %v646 = vrot.slane %v645, 4
    %v647 = vrot.slane %v55, 5
    %v648 = vsel %vm637, %v646, %v647
    %v649 = vrot.slane %v647, 4
    %v650 = vrot.slane %v73, 5
    %v651 = vsel %vm637, %v649, %v650
    %v652 = vrot.slane %v613, 5
    %v653 = vrot.slane %v652, 4
    %v654 = vrot.slane %v57, 5
    %v655 = vsel %vm637, %v653, %v654
    %v656 = vrot.slane %v654, 4
    %v657 = vrot.slane %v74, 5
    %v658 = vsel %vm637, %v656, %v657
    %v659 = vrot.slane %v614, 5
    %v660 = vrot.slane %v659, 4
    %v661 = vrot.slane %v59, 5
    %v662 = vsel %vm637, %v660, %v661
    %v663 = vrot.slane %v661, 4
    %v664 = vrot.slane %v75, 5
    %v665 = vsel %vm637, %v663, %v664
    %v666 = vrot.slane %v615, 5
    %v667 = vrot.slane %v666, 4
    %v668 = vrot.slane %v61, 5
    %v669 = vsel %vm637, %v667, %v668
    %v670 = vrot.slane %v668, 4
    %v671 = vrot.slane %v76, 5
    %v672 = vsel %vm637, %v670, %v671
    %v673 = vrot.slane %v616, 5
    %v674 = vrot.slane %v673, 4
    %v675 = vrot.slane %v63, 5
    %v676 = vsel %vm637, %v674, %v675
    %v677 = vrot.slane %v675, 4
    %v678 = vrot.slane %v77, 5
    %v679 = vsel %vm637, %v677, %v678
    %v680 = vrot.slane %v617, 5
    %v681 = vrot.slane %v680, 4
    %v682 = vrot.slane %v65, 5
    %v683 = vsel %vm637, %v681, %v682
    %v684 = vrot.slane %v682, 4
    %v685 = vrot.slane %v78, 5
    %v686 = vsel %vm637, %v684, %v685
    %v687 = vrot.slane %v618, 5
    %v688 = vrot.slane %v687, 4
    %v689 = vrot.slane %v67, 5
    %v690 = vsel %vm637, %v688, %v689
    %v691 = vrot.slane %v689, 4
    %v692 = vrot.slane %v79, 5
    %v693 = vsel %vm637, %v691, %v692
    %s694 = scalar_lea.vmem [#allocation5], 32
    %v695 = vld [vmem:[%s694] sm:$0xf]
    %v696 = vld [vmem:[%s694 + $0x4] sm:$0xf]
    %v697 = vld [vmem:[%s694 + $0x8] sm:$0xf]
    %v698 = vld [vmem:[%s694 + $0xc] sm:$0xf]
    %v699 = vunpack.c.l.b16 %v641
    %v700 = vunpack.c.l.b16 %v644
    %v701 = vunpack.c.l.b16 %v648
    %v702 = vunpack.c.l.b16 %v651
    %v703 = vunpack.c.l.b16 %v655
    %v704 = vunpack.c.l.b16 %v658
    %v705 = vunpack.c.l.b16 %v662
    %v706 = vunpack.c.l.b16 %v665
    %v707 = vunpack.c.l.b16 %v669
    %v708 = vunpack.c.l.b16 %v672
    %v709 = vunpack.c.l.b16 %v676
    %v710 = vunpack.c.l.b16 %v679
    %v711 = vunpack.c.l.b16 %v683
    %v712 = vunpack.c.l.b16 %v686
    %v713 = vunpack.c.l.b16 %v690
    %v714 = vunpack.c.l.b16 %v693
    %v715 = vpack.c.b16 %v700, %v699
    %v716 = vpack.c.b16 %v702, %v701
    %v717 = vpack.c.b16 %v704, %v703
    %v718 = vpack.c.b16 %v706, %v705
    %v719 = vpack.c.b16 %v708, %v707
    %v720 = vpack.c.b16 %v710, %v709
    %v721 = vpack.c.b16 %v712, %v711
    %v722 = vpack.c.b16 %v714, %v713
    %v727 = vunpack.c.l.b16 %v695
    %v728 = vunpack.c.l.b16 %v696
    %v729 = vunpack.c.l.b16 %v697
    %v730 = vunpack.c.l.b16 %v698
    %v731 = vpack.c.b16 %v728, %v727
    %v732 = vpack.c.b16 %v730, %v729
    %v736 = vsel %vm316, %v715, 0
    %v739 = vsel %vm316, %v716, 0
    %v742 = vsel %vm316, %v717, 0
    %v745 = vsel %vm316, %v718, 0
    %v748 = vsel %vm316, %v719, 0
    %v751 = vsel %vm316, %v720, 0
    %v754 = vsel %vm316, %v721, 0
    %v757 = vsel %vm316, %v722, 0
    %759 = vmatprep.subr.bf16.mxu0 0
    %760 = vmatpush1.bf16.msra.mxu0 %v731
    %761 = vmatprep.subr.bf16.mxu0 0
    %762 = vmatpush1.bf16.msra.mxu0 %v732
    %763 = vmatprep.subr.bf16.mxu0 0
    %764 = vmatpush1.bf16.msra.mxu0 0
    %765 = vmatprep.subr.bf16.mxu0 0
    %766 = vmatpush1.bf16.msra.mxu0 0
    %767 = vmatprep.subr.bf16.mxu0 0
    %768 = vmatpush1.bf16.msra.mxu0 0
    %769 = vmatprep.subr.bf16.mxu0 0
    %770 = vmatpush1.bf16.msra.mxu0 0
    %771 = vmatprep.subr.bf16.mxu0 0
    %772 = vmatpush1.bf16.msra.mxu0 0
    %773 = vmatprep.subr.bf16.mxu0 0
    %774 = vmatpush1.bf16.msra.mxu0 0
    %775 = vmatprep.subr.bf16.mxu0 0
    %776 = vmatpush1.bf16.msra.mxu0 0
    %777 = vmatprep.subr.bf16.mxu0 0
    %778 = vmatpush1.bf16.msra.mxu0 0
    %779 = vmatprep.subr.bf16.mxu0 0
    %780 = vmatpush1.bf16.msra.mxu0 0
    %781 = vmatprep.subr.bf16.mxu0 0
    %782 = vmatpush1.bf16.msra.mxu0 0
    %783 = vmatprep.subr.bf16.mxu0 0
    %784 = vmatpush1.bf16.msra.mxu0 0
    %785 = vmatprep.subr.bf16.mxu0 0
    %786 = vmatpush1.bf16.msra.mxu0 0
    %787 = vmatprep.subr.bf16.mxu0 0
    %788 = vmatpush1.bf16.msra.mxu0 0
    %789 = vmatprep.subr.bf16.mxu0 0
    %790 = vmatpush1.bf16.msra.mxu0 0
    %791 = vmatprep.mubr.bf16.mxu0 0
    %792 = vmatmul.mubr.bf16.gmra.mrb[0].mxu0 %v736
    %v793 = vpop.f32.mrb[0].mxu0
    %v794 = vadd.f32 0.0, %v793
    %v795 = vpop.f32.mrb[0].mxu0
    %v796 = vpop.f32.mrb[0].mxu0
    %v797 = vadd.f32 0.0, %v796
    %v798 = vpop.f32.mrb[0].mxu0
    %799 = vmatprep.mubr.bf16.mxu0 0
    %800 = vmatmul.mubr.bf16.gmra.mrb[0].mxu0 %v739
    %v801 = vpop.f32.mrb[0].mxu0
    %v802 = vadd.f32 0.0, %v801
    %v803 = vpop.f32.mrb[0].mxu0
    %v804 = vpop.f32.mrb[0].mxu0
    %v805 = vadd.f32 0.0, %v804
    %v806 = vpop.f32.mrb[0].mxu0
    %807 = vmatprep.mubr.bf16.mxu0 0
    %808 = vmatmul.mubr.bf16.gmra.mrb[0].mxu0 %v742
    %v809 = vpop.f32.mrb[0].mxu0
    %v810 = vadd.f32 0.0, %v809
    %v811 = vpop.f32.mrb[0].mxu0
    %v812 = vpop.f32.mrb[0].mxu0
    %v813 = vadd.f32 0.0, %v812
    %v814 = vpop.f32.mrb[0].mxu0
    %815 = vmatprep.mubr.bf16.mxu0 0
    %816 = vmatmul.mubr.bf16.gmra.mrb[0].mxu0 %v745
    %v817 = vpop.f32.mrb[0].mxu0
    %v818 = vadd.f32 0.0, %v817
    %v819 = vpop.f32.mrb[0].mxu0
    %v820 = vpop.f32.mrb[0].mxu0
    %v821 = vadd.f32 0.0, %v820
    %v822 = vpop.f32.mrb[0].mxu0
    %823 = vmatprep.mubr.bf16.mxu0 0
    %824 = vmatmul.mubr.bf16.gmra.mrb[0].mxu0 %v748
    %v825 = vpop.f32.mrb[0].mxu0
    %v826 = vadd.f32 0.0, %v825
    %v827 = vpop.f32.mrb[0].mxu0
    %v828 = vpop.f32.mrb[0].mxu0
    %v829 = vadd.f32 0.0, %v828
    %v830 = vpop.f32.mrb[0].mxu0
    %831 = vmatprep.mubr.bf16.mxu0 0
    %832 = vmatmul.mubr.bf16.gmra.mrb[0].mxu0 %v751
    %v833 = vpop.f32.mrb[0].mxu0
    %v834 = vadd.f32 0.0, %v833
    %v835 = vpop.f32.mrb[0].mxu0
    %v836 = vpop.f32.mrb[0].mxu0
    %v837 = vadd.f32 0.0, %v836
    %v838 = vpop.f32.mrb[0].mxu0
    %839 = vmatprep.mubr.bf16.mxu0 0
    %840 = vmatmul.mubr.bf16.gmra.mrb[0].mxu0 %v754
    %v841 = vpop.f32.mrb[0].mxu0
    %v842 = vadd.f32 0.0, %v841
    %v843 = vpop.f32.mrb[0].mxu0
    %v844 = vpop.f32.mrb[0].mxu0
    %v845 = vadd.f32 0.0, %v844
    %v846 = vpop.f32.mrb[0].mxu0
    %847 = vmatprep.mubr.bf16.mxu0 0
    %848 = vmatmul.mubr.bf16.gmra.mrb[0].mxu0 %v757
    %v849 = vpop.f32.mrb[0].mxu0
    %v850 = vadd.f32 0.0, %v849
    %v851 = vpop.f32.mrb[0].mxu0
    %v852 = vpop.f32.mrb[0].mxu0
    %v853 = vadd.f32 0.0, %v852
    %v854 = vpop.f32.mrb[0].mxu0
    %855 = vdwg.mxu0
    %v856 = vadd.f32 %v549, %v794
    %v857 = vadd.f32 %v552, %v797
    %v858 = vadd.f32 %v557, %v802
    %v859 = vadd.f32 %v560, %v805
    %v860 = vadd.f32 %v565, %v810
    %v861 = vadd.f32 %v568, %v813
    %v862 = vadd.f32 %v573, %v818
    %v863 = vadd.f32 %v576, %v821
    %v864 = vadd.f32 %v581, %v826
    %v865 = vadd.f32 %v584, %v829
    %v866 = vadd.f32 %v589, %v834
    %v867 = vadd.f32 %v592, %v837
    %v868 = vadd.f32 %v597, %v842
    %v869 = vadd.f32 %v600, %v845
    %v870 = vadd.f32 %v605, %v850
    %v871 = vadd.f32 %v608, %v853
    %v872 = vsel %vm47, 1, 0
    %v873 = vsel %vm48, 1, 0
    %vm874 = vcmp.eq.s32.totalorder %v872, 1
    %vm875 = vcmp.eq.s32.totalorder %v873, 1
    %v876 = vsel %vm874, %v856, -inf
    %v877 = vsel %vm875, %v857, -inf
    %v878 = vsel %vm874, %v858, -inf
    %v879 = vsel %vm875, %v859, -inf
    %v880 = vsel %vm874, %v860, -inf
    %v881 = vsel %vm875, %v861, -inf
    %v882 = vsel %vm874, %v862, -inf
    %v883 = vsel %vm875, %v863, -inf
    %v884 = vsel %vm874, %v864, -inf
    %v885 = vsel %vm875, %v865, -inf
    %v886 = vsel %vm874, %v866, -inf
    %v887 = vsel %vm875, %v867, -inf
    %v888 = vsel %vm874, %v868, -inf
    %v889 = vsel %vm875, %v869, -inf
    %v890 = vsel %vm874, %v870, -inf
    %v891 = vsel %vm875, %v871, -inf
    %v892 = vmax.f32 %v876, %v877
    %v893 = vrot.slane %v892, 4
    %v894 = vmax.f32 %v892, %v893
    %v895 = vrot.slane %v894, 2
    %v896 = vmax.f32 %v894, %v895
    %v897 = vrot.slane %v896, 1
    %v898 = vmax.f32 %v896, %v897
    %v899 = vmax.f32 %v878, %v879
    %v900 = vrot.slane %v899, 4
    %v901 = vmax.f32 %v899, %v900
    %v902 = vrot.slane %v901, 2
    %v903 = vmax.f32 %v901, %v902
    %v904 = vrot.slane %v903, 1
    %v905 = vmax.f32 %v903, %v904
    %v906 = vmax.f32 %v880, %v881
    %v907 = vrot.slane %v906, 4
    %v908 = vmax.f32 %v906, %v907
    %v909 = vrot.slane %v908, 2
    %v910 = vmax.f32 %v908, %v909
    %v911 = vrot.slane %v910, 1
    %v912 = vmax.f32 %v910, %v911
    %v913 = vmax.f32 %v882, %v883
    %v914 = vrot.slane %v913, 4
    %v915 = vmax.f32 %v913, %v914
    %v916 = vrot.slane %v915, 2
    %v917 = vmax.f32 %v915, %v916
    %v918 = vrot.slane %v917, 1
    %v919 = vmax.f32 %v917, %v918
    %v920 = vmax.f32 %v884, %v885
    %v921 = vrot.slane %v920, 4
    %v922 = vmax.f32 %v920, %v921
    %v923 = vrot.slane %v922, 2
    %v924 = vmax.f32 %v922, %v923
    %v925 = vrot.slane %v924, 1
    %v926 = vmax.f32 %v924, %v925
    %v927 = vmax.f32 %v886, %v887
    %v928 = vrot.slane %v927, 4
    %v929 = vmax.f32 %v927, %v928
    %v930 = vrot.slane %v929, 2
    %v931 = vmax.f32 %v929, %v930
    %v932 = vrot.slane %v931, 1
    %v933 = vmax.f32 %v931, %v932
    %v934 = vmax.f32 %v888, %v889
    %v935 = vrot.slane %v934, 4
    %v936 = vmax.f32 %v934, %v935
    %v937 = vrot.slane %v936, 2
    %v938 = vmax.f32 %v936, %v937
    %v939 = vrot.slane %v938, 1
    %v940 = vmax.f32 %v938, %v939
    %v941 = vmax.f32 %v890, %v891
    %v942 = vrot.slane %v941, 4
    %v943 = vmax.f32 %v941, %v942
    %v944 = vrot.slane %v943, 2
    %v945 = vmax.f32 %v943, %v944
    %v946 = vrot.slane %v945, 1
    %v947 = vmax.f32 %v945, %v946
    %v948 = vld [vmem:[%s2] sm:$0x1]
    %v950 = vlaneseq
    %v951 = vshrl.u32 %v950, 7
    %v952 = vsub.s32 0, %v951
    %v953 = vrot.slane %v948, %v952
    %v955 = vadd.f32 %v898, %v953
    %v956 = vadd.f32 %v905, %v953
    %v957 = vadd.f32 %v912, %v953
    %v958 = vadd.f32 %v919, %v953
    %v959 = vadd.f32 %v926, %v953
    %v960 = vadd.f32 %v933, %v953
    %v961 = vadd.f32 %v940, %v953
    %v962 = vadd.f32 %v947, %v953
    %v963 = vmax.f32 %v955, 0.0
    %v964 = vmax.f32 %v956, 0.0
    %v965 = vmax.f32 %v957, 0.0
    %v966 = vmax.f32 %v958, 0.0
    %v967 = vmax.f32 %v959, 0.0
    %v968 = vmax.f32 %v960, 0.0
    %v969 = vmax.f32 %v961, 0.0
    %v970 = vmax.f32 %v962, 0.0
    %v979 = vrot.slane %v964, 7
    %vm980 = vcmask 1041409
    %v981 = vsel %vm980, %v979, %v963
    %v982 = vrot.slane %v965, 6
    %vm983 = vcmask 1042434
    %v984 = vsel %vm983, %v982, %v981
    %v985 = vrot.slane %v966, 5
    %vm986 = vcmask 1043459
    %v987 = vsel %vm986, %v985, %v984
    %v988 = vrot.slane %v967, 4
    %vm989 = vcmask 1044484
    %v990 = vsel %vm989, %v988, %v987
    %v991 = vrot.slane %v968, 3
    %vm992 = vcmask 1045509
    %v993 = vsel %vm992, %v991, %v990
    %v994 = vrot.slane %v969, 2
    %vm995 = vcmask 1046534
    %v996 = vsel %vm995, %v994, %v993
    %v997 = vrot.slane %v970, 1
    %vm998 = vcmask 1047559
    %v999 = vsel %vm998, %v997, %v996
    %1001 = vst [vmem:[#allocation7] sm:$0xff] %v999
    // Predicated region
    $region22: #{tpu_custom_call.1} parent=1 // pred_check
      _
    $region23: #{tpu_custom_call.1} parent=1 // pred_check_branch
      %1003 = sbr.rel (0) target = $region25
    $region24: #{tpu_custom_call.1} parent=1 // pred_region
      %s1005 = ssub.s32 128, 128
      %1006 = vsyncadd [#allocation4], %s1005
      %s1008 = sshll.u32 [#allocation7], 4
      %s1009 = int_to_ptr.vmem [resolvable:$true] %s1008
      %1011 = dma.vmem_to_hbm [thread:$0]  %s1009, 128, %s3, [#allocation4]
    $region25: #{tpu_custom_call.1} parent=1 // pred_fallthru
      _
    // Predicated region
    $region26: #{tpu_custom_call.1} parent=1 // pred_check
      _
    $region27: #{tpu_custom_call.1} parent=1 // pred_check_branch
      %1013 = sbr.rel (0) target = $region29
    $region28: #{tpu_custom_call.1} parent=1 // pred_region
      %1014 = dma.done [#allocation4], 128
    $region29: #{tpu_custom_call.1} parent=1 // pred_fallthru
      _
    %1015 = vsyncpa [#allocation3], 1
    %1016 = vsyncpa [#allocation6], 1
    %1017 = vsyncpa [#allocation4], 1

</llo_original>
